<compile_context>
chip_gen: v7x
topology: tpu7x:2x2x1
jax: 0.10.0
libtpu: 0.0.40
codegen_flags: <defaults>
</compile_context>

<pallas_src>
import functools

import jax
import jax.numpy as jnp
from jax import lax
from jax.experimental import pallas as pl
from jax.experimental.pallas import tpu as pltpu


_LANE = 128
_EPS = 1e-5  # PyTorch nn.LayerNorm default


def _round_up(x, m):
    return ((x + m - 1) // m) * m


def _choose_tile_m(n):
    # Small batches: pad rows to a 16-row multiple only (bf16 sublane tile),
    # single grid step.  Large batches: 256-row tiles fill the 256-wide MXU on
    # v6e/v7x and give a >=2-step "parallel" grid for v7x's two TensorCores.
    if n <= 256:
        return _round_up(max(n, 1), 16)
    return 256


def _vmem_cap_bytes():
    try:
        phys = int(pltpu.get_tpu_info().vmem_capacity_bytes)
    except Exception:
        phys = 64 << 20  # conservative: assume v7x-sized VMEM
    # Leave headroom for Mosaic internal scratch / spill.
    return max(phys - (16 << 20), 16 << 20)


# ----------------------------------------------------------------------------
# Pallas kernel: the nn.Sequential classifier head
#   Linear(F -> I) -> Tanh -> LayerNorm(I) -> Dropout(0.2, eval) -> Linear(I -> L)
# Matmul operands bf16, accumulation + elementwise math f32, output bf16.
# ----------------------------------------------------------------------------
def _classifier_kernel(x_ref, w1_ref, b1_ref, gamma_ref, beta_ref,
                       w2_ref, b2_ref, out_ref, *, inv_inter):
    # Linear 1 (MXU, bf16 x bf16 -> f32) + bias, Tanh (EUP).
    h = jnp.dot(x_ref[...], w1_ref[...], preferred_element_type=jnp.float32)
    h = jnp.tanh(h + b1_ref[...])
    # LayerNorm over the TRUE intermediate width: W1/b1 padded columns are
    # zero, so padded lanes of h are exactly tanh(0)=0 and the unmasked sums
    # equal the true-lane sums.  gamma/beta/W2 zero padding kills any
    # padded-lane leakage into the second matmul.
    s1 = jnp.sum(h, axis=-1, keepdims=True)
    s2 = jnp.sum(h * h, axis=-1, keepdims=True)
    mean = s1 * inv_inter
    var = s2 * inv_inter - mean * mean
    hn = (h - mean) * lax.rsqrt(var + _EPS)
    hn = hn * gamma_ref[...] + beta_ref[...]
    # Dropout(p=0.2) is identity at inference time.
    # Linear 2 (MXU) + bias; lane-dense bf16 store.
    out = jnp.dot(hn.astype(w2_ref.dtype), w2_ref[...],
                  preferred_element_type=jnp.float32)
    out_ref[...] = (out + b2_ref[...]).astype(out_ref.dtype)


def classifier_head(x, padded_params, *, n_valid, tile_m):
    """x: (n_pad, f_pad) bf16 span representations (already padded).
    Returns (n_valid, label_num) f32 logits."""
    n_pad, f_pad = x.shape
    inter = padded_params["inter"]
    label_num = padded_params["label_num"]
    w1 = padded_params["w1"]
    b1 = padded_params["b1"]
    gamma = padded_params["gamma"]
    beta = padded_params["beta"]
    w2 = padded_params["w2"]
    b2 = padded_params["b2"]

    inter_pad = w1.shape[1]
    label_pad = w2.shape[1]
    assert w1.shape[0] == f_pad
    assert n_pad % tile_m == 0

    grid = (n_pad // tile_m,)

    # Demand-based VMEM budget, capped below physical (critical on v7x 64 MiB).
    w_bytes = (w1.size + w2.size) * 2                         # bf16 weights
    small_bytes = (b1.size + gamma.size + beta.size + b2.size) * 4
    tile_bytes = 2 * tile_m * f_pad * 2 + 2 * tile_m * label_pad * 2
    interm_bytes = 3 * tile_m * inter_pad * 4                 # h / hn f32 temps
    vmem_need = 2 * w_bytes + 2 * small_bytes + tile_bytes + interm_bytes
    vmem_limit = int(min(max(vmem_need + (8 << 20), 32 << 20), _vmem_cap_bytes()))

    flops = 2 * n_pad * (f_pad * inter_pad + inter_pad * label_pad)
    bytes_accessed = (n_pad * f_pad * 2 + w_bytes + small_bytes
                      + n_pad * label_pad * 2)

    kernel = functools.partial(_classifier_kernel, inv_inter=1.0 / float(inter))

    def run(single_buffer_weights):
        if single_buffer_weights:
            def cspec(shape):
                # Constant index_map -> one resident VMEM buffer is enough.
                return pl.BlockSpec(shape, lambda i: (0, 0),
                                    pipeline_mode=pl.Buffered(1))
        else:
            def cspec(shape):
                return pl.BlockSpec(shape, lambda i: (0, 0))

        return pl.pallas_call(
            kernel,
            out_shape=jax.ShapeDtypeStruct((n_pad, label_pad), jnp.bfloat16),
            grid_spec=pltpu.PrefetchScalarGridSpec(
                num_scalar_prefetch=0,
                grid=grid,
                in_specs=[
                    pl.BlockSpec((tile_m, f_pad), lambda i: (i, 0)),   # x tile
                    cspec((f_pad, inter_pad)),                         # W1
                    cspec((1, inter_pad)),                             # b1
                    cspec((1, inter_pad)),                             # LN gamma
                    cspec((1, inter_pad)),                             # LN beta
                    cspec((inter_pad, label_pad)),                     # W2
                    cspec((1, label_pad)),                             # b2
                ],
                out_specs=pl.BlockSpec((tile_m, label_pad), lambda i: (i, 0)),
            ),
            compiler_params=pltpu.CompilerParams(
                dimension_semantics=("parallel",),
                vmem_limit_bytes=vmem_limit),
            cost_estimate=pl.CostEstimate(
                flops=flops,
                transcendentals=n_pad * inter_pad,
                bytes_accessed=bytes_accessed),
        )(x, w1, b1, gamma, beta, w2, b2)

    try:
        out = run(True)            # single-buffered resident weights
    except Exception:
        out = run(False)           # fallback: default double-buffering

    # Slice padded rows / padded label lanes, upcast to f32 for the interface.
    return out[:n_valid, :label_num].astype(jnp.float32)


# ----------------------------------------------------------------------------
# Module-level wrapper mirroring FastR2D2SpanClassification.forward (numeric
# part: gather span embeddings -> classifier head).
# ----------------------------------------------------------------------------
def fast_r2d2_span_classification_forward(span_embeddings, span_cache_indices,
                                           padded_params, num_repr=1):
    """
    span_embeddings   : (cache_size, hidden)  -- stands in for results['tensor_cache']
    span_cache_indices: (num_spans * num_repr,) int32 -- cache ids found in the trees
    """
    cache_size, hidden = span_embeddings.shape
    hidden_pad = padded_params["hidden_pad"]

    # One pass over the node cache: cast to bf16 + lane-pad the hidden dim.
    # The gather below then emits rows already in the kernel's padded layout,
    # so the activations need no separate pad/astype round trip.
    emb = jnp.pad(span_embeddings.astype(jnp.bfloat16),
                  ((0, 0), (0, hidden_pad - hidden)))

    n = span_cache_indices.shape[0] // num_repr
    tile_m = _choose_tile_m(n)
    n_pad = _round_up(max(n, 1), tile_m)
    # Row padding via the index vector (index 0 is a valid cache row; the
    # resulting logits are sliced off in classifier_head).
    idx = jnp.pad(span_cache_indices.astype(jnp.int32),
                  (0, (n_pad - n) * num_repr))
    tgt = jnp.take(emb, idx, axis=0).reshape(n_pad, num_repr * hidden_pad)

    preds = classifier_head(tgt, padded_params, n_valid=n, tile_m=tile_m)
    lm_loss = jnp.zeros((1,), jnp.float32)
    kl_loss = jnp.zeros((1,), jnp.float32)
    return {"preds": preds, "model_loss": [lm_loss, kl_loss], "trees_dict": None}


# ----------------------------------------------------------------------------
# Parameters (shapes from the module's __init__) + lane padding / bf16 cast
# ----------------------------------------------------------------------------
def init_params(key, hidden_size, intermediate_size, label_num, num_repr):
    """Logical (unpadded, f32) parameters matching the nn.Sequential head."""
    k1, k2, k3, k4 = jax.random.split(key, 4)
    f = num_repr * hidden_size
    s1 = 1.0 / jnp.sqrt(float(f))
    s2 = 1.0 / jnp.sqrt(float(intermediate_size))
    return {
        "w1": jax.random.uniform(k1, (f, intermediate_size), jnp.float32, -s1, s1),
        "b1": jax.random.uniform(k2, (1, intermediate_size), jnp.float32, -s1, s1),
        "gamma": jnp.ones((1, intermediate_size), jnp.float32),
        "beta": jnp.zeros((1, intermediate_size), jnp.float32),
        "w2": jax.random.uniform(k3, (intermediate_size, label_num), jnp.float32, -s2, s2),
        "b2": jax.random.uniform(k4, (1, label_num), jnp.float32, -s2, s2),
    }


def pad_and_cast_params(params, hidden_size, num_repr):
    """Zero-pad feature dims to 128-lane multiples; matmul weights bf16.
    W1 rows are padded per num_repr block so that gathering the lane-padded
    cache rows and reshaping lines up with this layout without extra copies."""
    f, inter = params["w1"].shape
    assert f == num_repr * hidden_size
    label_num = params["w2"].shape[1]
    hidden_pad = _round_up(hidden_size, _LANE)
    inter_pad = _round_up(inter, _LANE)
    label_pad = _round_up(label_num, _LANE)

    w1 = params["w1"].reshape(num_repr, hidden_size, inter)
    w1 = jnp.pad(w1, ((0, 0), (0, hidden_pad - hidden_size),
                      (0, inter_pad - inter)))
    w1 = w1.reshape(num_repr * hidden_pad, inter_pad).astype(jnp.bfloat16)

    def pad2(a, rows, cols):
        return jnp.pad(a, ((0, rows - a.shape[0]), (0, cols - a.shape[1])))

    return {
        "w1": w1,
        "b1": pad2(params["b1"], 1, inter_pad),
        "gamma": pad2(params["gamma"], 1, inter_pad),
        "beta": pad2(params["beta"], 1, inter_pad),
        "w2": pad2(params["w2"], inter_pad, label_pad).astype(jnp.bfloat16),
        "b2": pad2(params["b2"], 1, label_pad),
        "inter": inter,
        "label_num": label_num,
        "hidden_pad": hidden_pad,
    }


# ----------------------------------------------------------------------------
# Pure-JAX references for the numerics check
# ----------------------------------------------------------------------------
def _reference_f32(tgt, p):
    h = jnp.tanh(tgt @ p["w1"] + p["b1"])
    mean = jnp.mean(h, axis=-1, keepdims=True)
    var = jnp.mean((h - mean) ** 2, axis=-1, keepdims=True)
    h = (h - mean) * lax.rsqrt(var + _EPS)
    h = h * p["gamma"] + p["beta"]
    return h @ p["w2"] + p["b2"]


def _reference_bf16(tgt, p):
    """Same compute recipe as the kernel (bf16 matmuls, f32 math, bf16 out)."""
    x = tgt.astype(jnp.bfloat16)
    h = jnp.dot(x, p["w1"].astype(jnp.bfloat16),
                preferred_element_type=jnp.float32) + p["b1"]
    h = jnp.tanh(h)
    mean = jnp.mean(h, axis=-1, keepdims=True)
    var = jnp.mean(h * h, axis=-1, keepdims=True) - mean * mean
    h = (h - mean) * lax.rsqrt(var + _EPS)
    h = h * p["gamma"] + p["beta"]
    out = jnp.dot(h.astype(jnp.bfloat16), p["w2"].astype(jnp.bfloat16),
                  preferred_element_type=jnp.float32) + p["b2"]
    return out.astype(jnp.bfloat16).astype(jnp.float32)


def _run_case(seed, hidden_size, intermediate_size, label_num, num_repr,
              cache_size, num_spans):
    key = jax.random.PRNGKey(seed)
    k_emb, k_idx, k_par = jax.random.split(key, 3)

    span_embeddings = jax.random.normal(k_emb, (cache_size, hidden_size),
                                        jnp.float32)
    span_cache_indices = jax.random.randint(
        k_idx, (num_spans * num_repr,), 0, cache_size, dtype=jnp.int32)
    params = init_params(k_par, hidden_size, intermediate_size, label_num,
                         num_repr)
    padded_params = pad_and_cast_params(params, hidden_size, num_repr)

    out = fast_r2d2_span_classification_forward(
        span_embeddings, span_cache_indices, padded_params, num_repr=num_repr)
    preds = jax.block_until_ready(out["preds"])
    assert preds.shape == (num_spans, label_num)

    # numerics check against pure-JAX references of the classifier head
    tgt = jnp.take(span_embeddings, span_cache_indices, axis=0).reshape(
        -1, num_repr * hidden_size)
    ref_bf16 = _reference_bf16(tgt, params)   # same bf16 compute recipe
    ref_f32 = _reference_f32(tgt, params)     # full-f32 PyTorch-equivalent
    assert jnp.allclose(preds, ref_bf16, atol=1e-2, rtol=1e-2), (
        float(jnp.max(jnp.abs(preds - ref_bf16))))
    assert jnp.allclose(preds, ref_f32, atol=6e-2, rtol=6e-2), (
        float(jnp.max(jnp.abs(preds - ref_f32))))


if __name__ == "__main__":
    # Case 1: hidden=32, intermediate=128, label_num=8, num_repr=1;
    # 16 span queries over a tensor cache of 64 node embeddings.
    _run_case(seed=0, hidden_size=32, intermediate_size=128, label_num=8,
              num_repr=1, cache_size=64, num_spans=16)
    # Case 2: num_repr=2 with ragged sizes exercises the per-repr lane padding
    # and row-padding-through-indices paths.
    _run_case(seed=1, hidden_size=48, intermediate_size=200, label_num=5,
              num_repr=2, cache_size=80, num_spans=10)
    print("KERNEL_OK")
</pallas_src>

<mosaic_0001>
module attributes {stable_mosaic.version = 11 : i64} {
  func.func @_classifier_kernel(%arg0: i32, %arg1: memref<16x128xbf16, #tpu.memory_space<vmem>>, %arg2: memref<128x128xbf16, #tpu.memory_space<vmem>>, %arg3: memref<1x128xf32, #tpu.memory_space<vmem>>, %arg4: memref<1x128xf32, #tpu.memory_space<vmem>>, %arg5: memref<1x128xf32, #tpu.memory_space<vmem>>, %arg6: memref<128x128xbf16, #tpu.memory_space<vmem>>, %arg7: memref<1x128xf32, #tpu.memory_space<vmem>>, %arg8: memref<16x128xbf16, #tpu.memory_space<vmem>>) attributes {dimension_semantics = [#tpu.dimension_semantics<parallel>], iteration_bounds = array<i64: 1>, scalar_prefetch = 0 : i64, scratch_operands = 0 : i64, tpu.core_type = #tpu.core_type<tc>, window_params = [{transform_indices = @transform_0, window_bounds = array<i64: 16, 128>}, {pipeline_mode = #tpu.pipeline_mode<synchronous>, transform_indices = @transform_1, window_bounds = array<i64: 128, 128>}, {pipeline_mode = #tpu.pipeline_mode<synchronous>, transform_indices = @transform_2, window_bounds = array<i64: 1, 128>}, {pipeline_mode = #tpu.pipeline_mode<synchronous>, transform_indices = @transform_3, window_bounds = array<i64: 1, 128>}, {pipeline_mode = #tpu.pipeline_mode<synchronous>, transform_indices = @transform_4, window_bounds = array<i64: 1, 128>}, {pipeline_mode = #tpu.pipeline_mode<synchronous>, transform_indices = @transform_5, window_bounds = array<i64: 128, 128>}, {pipeline_mode = #tpu.pipeline_mode<synchronous>, transform_indices = @transform_6, window_bounds = array<i64: 1, 128>}, {transform_indices = @transform_7, window_bounds = array<i64: 16, 128>}]} {
    %c0 = arith.constant 0 : index
    %c0_0 = arith.constant 0 : index
    %0 = vector.load %arg1[%c0, %c0_0] : memref<16x128xbf16, #tpu.memory_space<vmem>>, vector<16x128xbf16>
    %c0_1 = arith.constant 0 : index
    %c0_2 = arith.constant 0 : index
    %1 = vector.load %arg2[%c0_1, %c0_2] : memref<128x128xbf16, #tpu.memory_space<vmem>>, vector<128x128xbf16>
    %cst = arith.constant dense<0.000000e+00> : vector<16x128xf32>
    %2 = tpu.matmul %0, %1, %cst {dimension_numbers = #tpu.dot_dimension_numbers<[1], [0], [0], [1], [0, 0, 1, 1], [], []>} : vector<16x128xbf16>, vector<128x128xbf16>, vector<16x128xf32> -> vector<16x128xf32>
    %c0_3 = arith.constant 0 : index
    %c0_4 = arith.constant 0 : index
    %3 = vector.load %arg3[%c0_3, %c0_4] : memref<1x128xf32, #tpu.memory_space<vmem>>, vector<1x128xf32>
    %4 = vector.broadcast %3 : vector<1x128xf32> to vector<16x128xf32>
    %5 = arith.addf %2, %4 : vector<16x128xf32>
    %6 = math.tanh %5 : vector<16x128xf32>
    %cst_5 = arith.constant dense<0.000000e+00> : vector<16xf32>
    %7 = vector.multi_reduction <add>, %6, %cst_5 [1] : vector<16x128xf32> to vector<16xf32>
    %8 = vector.shape_cast %7 : vector<16xf32> to vector<16x1xf32>
    %9 = arith.mulf %6, %6 : vector<16x128xf32>
    %cst_6 = arith.constant dense<0.000000e+00> : vector<16xf32>
    %10 = vector.multi_reduction <add>, %9, %cst_6 [1] : vector<16x128xf32> to vector<16xf32>
    %11 = vector.shape_cast %10 : vector<16xf32> to vector<16x1xf32>
    %cst_7 = arith.constant 7.812500e-03 : f32
    %12 = vector.broadcast %cst_7 : f32 to vector<16x1xf32>
    %13 = arith.mulf %8, %12 : vector<16x1xf32>
    %cst_8 = arith.constant 7.812500e-03 : f32
    %14 = vector.broadcast %cst_8 : f32 to vector<16x1xf32>
    %15 = arith.mulf %11, %14 : vector<16x1xf32>
    %16 = arith.mulf %13, %13 : vector<16x1xf32>
    %17 = arith.subf %15, %16 : vector<16x1xf32>
    %18 = vector.broadcast %13 : vector<16x1xf32> to vector<16x128xf32>
    %19 = arith.subf %6, %18 : vector<16x128xf32>
    %cst_9 = arith.constant 9.99999974E-6 : f32
    %20 = vector.broadcast %cst_9 : f32 to vector<16x1xf32>
    %21 = arith.addf %17, %20 : vector<16x1xf32>
    %22 = math.rsqrt %21 : vector<16x1xf32>
    %23 = vector.broadcast %22 : vector<16x1xf32> to vector<16x128xf32>
    %24 = arith.mulf %19, %23 : vector<16x128xf32>
    %c0_10 = arith.constant 0 : index
    %c0_11 = arith.constant 0 : index
    %25 = vector.load %arg4[%c0_10, %c0_11] : memref<1x128xf32, #tpu.memory_space<vmem>>, vector<1x128xf32>
    %26 = vector.broadcast %25 : vector<1x128xf32> to vector<16x128xf32>
    %27 = arith.mulf %24, %26 : vector<16x128xf32>
    %c0_12 = arith.constant 0 : index
    %c0_13 = arith.constant 0 : index
    %28 = vector.load %arg5[%c0_12, %c0_13] : memref<1x128xf32, #tpu.memory_space<vmem>>, vector<1x128xf32>
    %29 = vector.broadcast %28 : vector<1x128xf32> to vector<16x128xf32>
    %30 = arith.addf %27, %29 : vector<16x128xf32>
    %31 = arith.truncf %30 : vector<16x128xf32> to vector<16x128xbf16>
    %c0_14 = arith.constant 0 : index
    %c0_15 = arith.constant 0 : index
    %32 = vector.load %arg6[%c0_14, %c0_15] : memref<128x128xbf16, #tpu.memory_space<vmem>>, vector<128x128xbf16>
    %cst_16 = arith.constant dense<0.000000e+00> : vector<16x128xf32>
    %33 = tpu.matmul %31, %32, %cst_16 {dimension_numbers = #tpu.dot_dimension_numbers<[1], [0], [0], [1], [0, 0, 1, 1], [], []>} : vector<16x128xbf16>, vector<128x128xbf16>, vector<16x128xf32> -> vector<16x128xf32>
    %c0_17 = arith.constant 0 : index
    %c0_18 = arith.constant 0 : index
    %34 = vector.load %arg7[%c0_17, %c0_18] : memref<1x128xf32, #tpu.memory_space<vmem>>, vector<1x128xf32>
    %35 = vector.broadcast %34 : vector<1x128xf32> to vector<16x128xf32>
    %36 = arith.addf %33, %35 : vector<16x128xf32>
    %37 = arith.truncf %36 : vector<16x128xf32> to vector<16x128xbf16>
    %c0_19 = arith.constant 0 : index
    %c0_20 = arith.constant 0 : index
    %38 = vector.load %arg8[%c0_19, %c0_20] : memref<16x128xbf16, #tpu.memory_space<vmem>>, vector<16x128xbf16>
    tpu.vector_store %arg8[%c0_19, %c0_20], %37 {strides = array<i32>} : memref<16x128xbf16, #tpu.memory_space<vmem>>, vector<16x128xbf16>,
    return
  }
  func.func @transform_0(%arg0: i32) -> (i32, i32) {
    %c0_i32 = arith.constant 0 : i32
    %c0_i32_0 = arith.constant 0 : i32
    return %arg0, %c0_i32 : i32, i32
  }
  func.func @transform_1(%arg0: i32) -> (i32, i32) {
    %c0_i32 = arith.constant 0 : i32
    %c0_i32_0 = arith.constant 0 : i32
    %c0_i32_1 = arith.constant 0 : i32
    return %c0_i32, %c0_i32_0 : i32, i32
  }
  func.func @transform_2(%arg0: i32) -> (i32, i32) {
    %c0_i32 = arith.constant 0 : i32
    %c0_i32_0 = arith.constant 0 : i32
    %c0_i32_1 = arith.constant 0 : i32
    return %c0_i32, %c0_i32_0 : i32, i32
  }
  func.func @transform_3(%arg0: i32) -> (i32, i32) {
    %c0_i32 = arith.constant 0 : i32
    %c0_i32_0 = arith.constant 0 : i32
    %c0_i32_1 = arith.constant 0 : i32
    return %c0_i32, %c0_i32_0 : i32, i32
  }
  func.func @transform_4(%arg0: i32) -> (i32, i32) {
    %c0_i32 = arith.constant 0 : i32
    %c0_i32_0 = arith.constant 0 : i32
    %c0_i32_1 = arith.constant 0 : i32
    return %c0_i32, %c0_i32_0 : i32, i32
  }
  func.func @transform_5(%arg0: i32) -> (i32, i32) {
    %c0_i32 = arith.constant 0 : i32
    %c0_i32_0 = arith.constant 0 : i32
    %c0_i32_1 = arith.constant 0 : i32
    return %c0_i32, %c0_i32_0 : i32, i32
  }
  func.func @transform_6(%arg0: i32) -> (i32, i32) {
    %c0_i32 = arith.constant 0 : i32
    %c0_i32_0 = arith.constant 0 : i32
    %c0_i32_1 = arith.constant 0 : i32
    return %c0_i32, %c0_i32_0 : i32, i32
  }
  func.func @transform_7(%arg0: i32) -> (i32, i32) {
    %c0_i32 = arith.constant 0 : i32
    %c0_i32_0 = arith.constant 0 : i32
    return %arg0, %c0_i32 : i32, i32
  }
}

module attributes {stable_mosaic.version = 11 : i64} {
  func.func @_classifier_kernel(%arg0: i32, %arg1: memref<16x128xbf16, #tpu.memory_space<vmem>>, %arg2: memref<128x128xbf16, #tpu.memory_space<vmem>>, %arg3: memref<1x128xf32, #tpu.memory_space<vmem>>, %arg4: memref<1x128xf32, #tpu.memory_space<vmem>>, %arg5: memref<1x128xf32, #tpu.memory_space<vmem>>, %arg6: memref<128x128xbf16, #tpu.memory_space<vmem>>, %arg7: memref<1x128xf32, #tpu.memory_space<vmem>>, %arg8: memref<16x128xbf16, #tpu.memory_space<vmem>>) attributes {dimension_semantics = [#tpu.dimension_semantics<parallel>], iteration_bounds = array<i64: 1>, scalar_prefetch = 0 : i64, scratch_operands = 0 : i64, tpu.core_type = #tpu.core_type<tc>, window_params = [{transform_indices = @transform_0, window_bounds = array<i64: 16, 128>}, {pipeline_mode = #tpu.pipeline_mode<synchronous>, transform_indices = @transform_1, window_bounds = array<i64: 128, 128>}, {pipeline_mode = #tpu.pipeline_mode<synchronous>, transform_indices = @transform_2, window_bounds = array<i64: 1, 128>}, {pipeline_mode = #tpu.pipeline_mode<synchronous>, transform_indices = @transform_3, window_bounds = array<i64: 1, 128>}, {pipeline_mode = #tpu.pipeline_mode<synchronous>, transform_indices = @transform_4, window_bounds = array<i64: 1, 128>}, {pipeline_mode = #tpu.pipeline_mode<synchronous>, transform_indices = @transform_5, window_bounds = array<i64: 128, 128>}, {pipeline_mode = #tpu.pipeline_mode<synchronous>, transform_indices = @transform_6, window_bounds = array<i64: 1, 128>}, {transform_indices = @transform_7, window_bounds = array<i64: 16, 128>}]} {
    %c0 = arith.constant 0 : index
    %c0_0 = arith.constant 0 : index
    %0 = vector.load %arg1[%c0, %c0_0] : memref<16x128xbf16, #tpu.memory_space<vmem>>, vector<16x128xbf16>
    %c0_1 = arith.constant 0 : index
    %c0_2 = arith.constant 0 : index
    %1 = vector.load %arg2[%c0_1, %c0_2] : memref<128x128xbf16, #tpu.memory_space<vmem>>, vector<128x128xbf16>
    %cst = arith.constant dense<0.000000e+00> : vector<16x128xf32>
    %2 = tpu.matmul %0, %1, %cst {dimension_numbers = #tpu.dot_dimension_numbers<[1], [0], [0], [1], [0, 0, 1, 1], [], []>} : vector<16x128xbf16>, vector<128x128xbf16>, vector<16x128xf32> -> vector<16x128xf32>
    %c0_3 = arith.constant 0 : index
    %c0_4 = arith.constant 0 : index
    %3 = vector.load %arg3[%c0_3, %c0_4] : memref<1x128xf32, #tpu.memory_space<vmem>>, vector<1x128xf32>
    %4 = vector.broadcast %3 : vector<1x128xf32> to vector<16x128xf32>
    %5 = arith.addf %2, %4 : vector<16x128xf32>
    %6 = math.tanh %5 : vector<16x128xf32>
    %cst_5 = arith.constant dense<0.000000e+00> : vector<16xf32>
    %7 = vector.multi_reduction <add>, %6, %cst_5 [1] : vector<16x128xf32> to vector<16xf32>
    %8 = vector.shape_cast %7 : vector<16xf32> to vector<16x1xf32>
    %9 = arith.mulf %6, %6 : vector<16x128xf32>
    %cst_6 = arith.constant dense<0.000000e+00> : vector<16xf32>
    %10 = vector.multi_reduction <add>, %9, %cst_6 [1] : vector<16x128xf32> to vector<16xf32>
    %11 = vector.shape_cast %10 : vector<16xf32> to vector<16x1xf32>
    %cst_7 = arith.constant 7.812500e-03 : f32
    %12 = vector.broadcast %cst_7 : f32 to vector<16x1xf32>
    %13 = arith.mulf %8, %12 : vector<16x1xf32>
    %cst_8 = arith.constant 7.812500e-03 : f32
    %14 = vector.broadcast %cst_8 : f32 to vector<16x1xf32>
    %15 = arith.mulf %11, %14 : vector<16x1xf32>
    %16 = arith.mulf %13, %13 : vector<16x1xf32>
    %17 = arith.subf %15, %16 : vector<16x1xf32>
    %18 = vector.broadcast %13 : vector<16x1xf32> to vector<16x128xf32>
    %19 = arith.subf %6, %18 : vector<16x128xf32>
    %cst_9 = arith.constant 9.99999974E-6 : f32
    %20 = vector.broadcast %cst_9 : f32 to vector<16x1xf32>
    %21 = arith.addf %17, %20 : vector<16x1xf32>
    %22 = math.rsqrt %21 : vector<16x1xf32>
    %23 = vector.broadcast %22 : vector<16x1xf32> to vector<16x128xf32>
    %24 = arith.mulf %19, %23 : vector<16x128xf32>
    %c0_10 = arith.constant 0 : index
    %c0_11 = arith.constant 0 : index
    %25 = vector.load %arg4[%c0_10, %c0_11] : memref<1x128xf32, #tpu.memory_space<vmem>>, vector<1x128xf32>
    %26 = vector.broadcast %25 : vector<1x128xf32> to vector<16x128xf32>
    %27 = arith.mulf %24, %26 : vector<16x128xf32>
    %c0_12 = arith.constant 0 : index
    %c0_13 = arith.constant 0 : index
    %28 = vector.load %arg5[%c0_12, %c0_13] : memref<1x128xf32, #tpu.memory_space<vmem>>, vector<1x128xf32>
    %29 = vector.broadcast %28 : vector<1x128xf32> to vector<16x128xf32>
    %30 = arith.addf %27, %29 : vector<16x128xf32>
    %31 = arith.truncf %30 : vector<16x128xf32> to vector<16x128xbf16>
    %c0_14 = arith.constant 0 : index
    %c0_15 = arith.constant 0 : index
    %32 = vector.load %arg6[%c0_14, %c0_15] : memref<128x128xbf16, #tpu.memory_space<vmem>>, vector<128x128xbf16>
    %cst_16 = arith.constant dense<0.000000e+00> : vector<16x128xf32>
    %33 = tpu.matmul %31, %32, %cst_16 {dimension_numbers = #tpu.dot_dimension_numbers<[1], [0], [0], [1], [0, 0, 1, 1], [], []>} : vector<16x128xbf16>, vector<128x128xbf16>, vector<16x128xf32> -> vector<16x128xf32>
    %c0_17 = arith.constant 0 : index
    %c0_18 = arith.constant 0 : index
    %34 = vector.load %arg7[%c0_17, %c0_18] : memref<1x128xf32, #tpu.memory_space<vmem>>, vector<1x128xf32>
    %35 = vector.broadcast %34 : vector<1x128xf32> to vector<16x128xf32>
    %36 = arith.addf %33, %35 : vector<16x128xf32>
    %37 = arith.truncf %36 : vector<16x128xf32> to vector<16x128xbf16>
    %c0_19 = arith.constant 0 : index
    %c0_20 = arith.constant 0 : index
    %38 = vector.load %arg8[%c0_19, %c0_20] : memref<16x128xbf16, #tpu.memory_space<vmem>>, vector<16x128xbf16>
    tpu.vector_store %arg8[%c0_19, %c0_20], %37 {strides = array<i32>} : memref<16x128xbf16, #tpu.memory_space<vmem>>, vector<16x128xbf16>,
    return
  }
  func.func @transform_0(%arg0: i32) -> (i32, i32) {
    %c0_i32 = arith.constant 0 : i32
    %c0_i32_0 = arith.constant 0 : i32
    return %arg0, %c0_i32 : i32, i32
  }
  func.func @transform_1(%arg0: i32) -> (i32, i32) {
    %c0_i32 = arith.constant 0 : i32
    %c0_i32_0 = arith.constant 0 : i32
    %c0_i32_1 = arith.constant 0 : i32
    return %c0_i32, %c0_i32_0 : i32, i32
  }
  func.func @transform_2(%arg0: i32) -> (i32, i32) {
    %c0_i32 = arith.constant 0 : i32
    %c0_i32_0 = arith.constant 0 : i32
    %c0_i32_1 = arith.constant 0 : i32
    return %c0_i32, %c0_i32_0 : i32, i32
  }
  func.func @transform_3(%arg0: i32) -> (i32, i32) {
    %c0_i32 = arith.constant 0 : i32
    %c0_i32_0 = arith.constant 0 : i32
    %c0_i32_1 = arith.constant 0 : i32
    return %c0_i32, %c0_i32_0 : i32, i32
  }
  func.func @transform_4(%arg0: i32) -> (i32, i32) {
    %c0_i32 = arith.constant 0 : i32
    %c0_i32_0 = arith.constant 0 : i32
    %c0_i32_1 = arith.constant 0 : i32
    return %c0_i32, %c0_i32_0 : i32, i32
  }
  func.func @transform_5(%arg0: i32) -> (i32, i32) {
    %c0_i32 = arith.constant 0 : i32
    %c0_i32_0 = arith.constant 0 : i32
    %c0_i32_1 = arith.constant 0 : i32
    return %c0_i32, %c0_i32_0 : i32, i32
  }
  func.func @transform_6(%arg0: i32) -> (i32, i32) {
    %c0_i32 = arith.constant 0 : i32
    %c0_i32_0 = arith.constant 0 : i32
    %c0_i32_1 = arith.constant 0 : i32
    return %c0_i32, %c0_i32_0 : i32, i32
  }
  func.func @transform_7(%arg0: i32) -> (i32, i32) {
    %c0_i32 = arith.constant 0 : i32
    %c0_i32_0 = arith.constant 0 : i32
    return %arg0, %c0_i32 : i32, i32
  }
}

</mosaic_0001>

<llo_original>
// kernel: tpu_custom_call.1
$region0: #{tpu_custom_call.1}
  #allocation0 [shape = 'u32[]', space=smem, size = 0x4, offset = 0x4, fixed_abs, tag = 'smem constant byte address 0x4 - core index']
  #allocation1 [shape = 'u32[144,128]{1,0:T(1,128)}', space=vmem, size = 0x12000, scoped, tag = 'internal scratch']
  %s0 = inlined_call_operand.hbm [shape: bf16[16,128], index: 0, kind: input, shape index: {}]
  %s1 = inlined_call_operand.hbm [shape: bf16[128,128], index: 1, kind: input, shape index: {}]
  %s2 = inlined_call_operand.vmem [shape: f32[1,128], index: 2, kind: input, shape index: {}]
  %s3 = inlined_call_operand.vmem [shape: f32[1,128], index: 3, kind: input, shape index: {}]
  %s4 = inlined_call_operand.vmem [shape: f32[1,128], index: 4, kind: input, shape index: {}]
  %s5 = inlined_call_operand.hbm [shape: bf16[128,128], index: 5, kind: input, shape index: {}]
  %s6 = inlined_call_operand.vmem [shape: f32[1,128], index: 6, kind: input, shape index: {}]
  %s7 = inlined_call_operand.hbm [shape: bf16[16,128], index: 7, kind: output, shape index: {}]
  %s8 = sld [smem:[#allocation0]]
  $region50: #{tpu_custom_call.1} parent=0
    _
  %s10 = ssub.s32 1, %s8
  %s11 = scalar_select 0, %s10, %s8
  $region1: #{tpu_custom_call.1} parent=0
    #allocation2 [shape = 'u8[4096]{0}', space=vmem, size = 0x1000, scoped, tag = 'input window, operand 0, single buffered']
    #allocation3 [shape = 's32[1]{0}', space=sflag, size = 0x4, scoped, tag = 'scoped memory for tpu_custom_call.1']
    #allocation4 [shape = 's32[1]{0}', space=sflag, size = 0x4, scoped, tag = 'scoped memory for tpu_custom_call.1']
    #allocation5 [shape = 'u8[32768]{0}', space=vmem, size = 0x8000, scoped, tag = 'input window, operand 1, single buffered']
    #allocation6 [shape = 's32[1]{0}', space=sflag, size = 0x4, scoped, tag = 'scoped memory for tpu_custom_call.1']
    #allocation7 [shape = 'u8[32768]{0}', space=vmem, size = 0x8000, scoped, tag = 'input window, operand 5, single buffered']
    #allocation8 [shape = 'u8[4096]{0}', space=vmem, size = 0x1000, scoped, tag = 'output window, operand 0, single buffered']
    %12 = vsyncpa [#allocation3], 0
    %13 = vsyncpa [#allocation6], 0
    %14 = vsyncpa [#allocation4], 0
    // Predicated region
    $region2: #{tpu_custom_call.1} parent=1 // pred_check
      _
    $region3: #{tpu_custom_call.1} parent=1 // pred_check_branch
      %16 = sbr.rel (0) target = $region5
    $region4: #{tpu_custom_call.1} parent=1 // pred_region
      %s18 = ssub.s32 128, 128
      %19 = vsyncadd [#allocation3], %s18
      %s20 = sshll.u32 [#allocation2], 4
      %s21 = int_to_ptr.vmem [resolvable:$true] %s20
      %26 = dma.hbm_to_vmem [thread:$0]  %s0, 128, %s21, [#allocation3], 64, 64, 4
    $region5: #{tpu_custom_call.1} parent=1 // pred_fallthru
      _
    // Predicated region
    $region6: #{tpu_custom_call.1} parent=1 // pred_check
      _
    $region7: #{tpu_custom_call.1} parent=1 // pred_check_branch
      %28 = sbr.rel (0) target = $region9
    $region8: #{tpu_custom_call.1} parent=1 // pred_region
      %s30 = ssub.s32 1024, 1024
      %31 = vsyncadd [#allocation6], %s30
      %s32 = sshll.u32 [#allocation5], 4
      %s33 = int_to_ptr.vmem [resolvable:$true] %s32
      %38 = dma.hbm_to_vmem [thread:$0]  %s1, 1024, %s33, [#allocation6], 64, 64, 4
    $region9: #{tpu_custom_call.1} parent=1 // pred_fallthru
      _
    // Predicated region
    $region10: #{tpu_custom_call.1} parent=1 // pred_check
      _
    $region11: #{tpu_custom_call.1} parent=1 // pred_check_branch
      %40 = sbr.rel (0) target = $region13
    $region12: #{tpu_custom_call.1} parent=1 // pred_region
      _
    $region13: #{tpu_custom_call.1} parent=1 // pred_fallthru
      _
    // Predicated region
    $region14: #{tpu_custom_call.1} parent=1 // pred_check
      _
    $region15: #{tpu_custom_call.1} parent=1 // pred_check_branch
      %42 = sbr.rel (0) target = $region17
    $region16: #{tpu_custom_call.1} parent=1 // pred_region
      _
    $region17: #{tpu_custom_call.1} parent=1 // pred_fallthru
      _
    // Predicated region
    $region18: #{tpu_custom_call.1} parent=1 // pred_check
      _
    $region19: #{tpu_custom_call.1} parent=1 // pred_check_branch
      %44 = sbr.rel (0) target = $region21
    $region20: #{tpu_custom_call.1} parent=1 // pred_region
      _
    $region21: #{tpu_custom_call.1} parent=1 // pred_fallthru
      _
    // Predicated region
    $region22: #{tpu_custom_call.1} parent=1 // pred_check
      _
    $region23: #{tpu_custom_call.1} parent=1 // pred_check_branch
      %46 = sbr.rel (0) target = $region25
    $region24: #{tpu_custom_call.1} parent=1 // pred_region
      %s48 = ssub.s32 1024, 1024
      %49 = vsyncadd [#allocation6], %s48
      %s50 = sshll.u32 [#allocation7], 4
      %s51 = int_to_ptr.vmem [resolvable:$true] %s50
      %56 = dma.hbm_to_vmem [thread:$0]  %s5, 1024, %s51, [#allocation6], 64, 64, 4
    $region25: #{tpu_custom_call.1} parent=1 // pred_fallthru
      _
    // Predicated region
    $region26: #{tpu_custom_call.1} parent=1 // pred_check
      _
    $region27: #{tpu_custom_call.1} parent=1 // pred_check_branch
      %58 = sbr.rel (0) target = $region29
    $region28: #{tpu_custom_call.1} parent=1 // pred_region
      _
    $region29: #{tpu_custom_call.1} parent=1 // pred_fallthru
      _
    // Predicated region
    $region30: #{tpu_custom_call.1} parent=1 // pred_check
      _
    $region31: #{tpu_custom_call.1} parent=1 // pred_check_branch
      %60 = sbr.rel (0) target = $region33
    $region32: #{tpu_custom_call.1} parent=1 // pred_region
      %61 = dma.done [#allocation3], 128
    $region33: #{tpu_custom_call.1} parent=1 // pred_fallthru
      _
    // Predicated region
    $region34: #{tpu_custom_call.1} parent=1 // pred_check
      _
    $region35: #{tpu_custom_call.1} parent=1 // pred_check_branch
      %63 = sbr.rel (0) target = $region37
    $region36: #{tpu_custom_call.1} parent=1 // pred_region
      %64 = dma.done [#allocation6], 1024
    $region37: #{tpu_custom_call.1} parent=1 // pred_fallthru
      _
    // Predicated region
    $region38: #{tpu_custom_call.1} parent=1 // pred_check
      _
    $region39: #{tpu_custom_call.1} parent=1 // pred_check_branch
      %66 = sbr.rel (0) target = $region41
    $region40: #{tpu_custom_call.1} parent=1 // pred_region
      %67 = dma.done [#allocation6], 1024
    $region41: #{tpu_custom_call.1} parent=1 // pred_fallthru
      _
    %v69 = vld [vmem:[#allocation2] sm:$0xf]
    %v70 = vld [vmem:[#allocation2 + $0x4] sm:$0xf]
    %v71 = vld [vmem:[#allocation5] sm:$0xf]
    %v72 = vld [vmem:[#allocation5 + $0x4] sm:$0xf]
    %v73 = vld [vmem:[#allocation5 + $0x8] sm:$0xf]
    %v74 = vld [vmem:[#allocation5 + $0xc] sm:$0xf]
    %v75 = vld [vmem:[#allocation5 + $0x10] sm:$0xf]
    %v76 = vld [vmem:[#allocation5 + $0x14] sm:$0xf]
    %v77 = vld [vmem:[#allocation5 + $0x18] sm:$0xf]
    %v78 = vld [vmem:[#allocation5 + $0x1c] sm:$0xf]
    %v79 = vld [vmem:[#allocation5 + $0x20] sm:$0xf]
    %v80 = vld [vmem:[#allocation5 + $0x24] sm:$0xf]
    %v81 = vld [vmem:[#allocation5 + $0x28] sm:$0xf]
    %v82 = vld [vmem:[#allocation5 + $0x2c] sm:$0xf]
    %v83 = vld [vmem:[#allocation5 + $0x30] sm:$0xf]
    %v84 = vld [vmem:[#allocation5 + $0x34] sm:$0xf]
    %v85 = vld [vmem:[#allocation5 + $0x38] sm:$0xf]
    %v86 = vld [vmem:[#allocation5 + $0x3c] sm:$0xf]
    %v87 = vld [vmem:[%s2] sm:$0x1]
    %v89 = vlaneseq
    %v90 = vshrl.u32 %v89, 7
    %v91 = vsub.s32 0, %v90
    %v92 = vrot.slane %v87, %v91
    %v96 = vunpack.c.l.b16 %v69
    %v97 = vunpack.c.l.b16 %v70
    %v98 = vpack.c.b16 %v97, %v96
    %v116 = vunpack.c.l.b16 %v71
    %v117 = vunpack.c.l.b16 %v72
    %v118 = vunpack.c.l.b16 %v73
    %v119 = vunpack.c.l.b16 %v74
    %v120 = vunpack.c.l.b16 %v75
    %v121 = vunpack.c.l.b16 %v76
    %v122 = vunpack.c.l.b16 %v77
    %v123 = vunpack.c.l.b16 %v78
    %v124 = vunpack.c.l.b16 %v79
    %v125 = vunpack.c.l.b16 %v80
    %v126 = vunpack.c.l.b16 %v81
    %v127 = vunpack.c.l.b16 %v82
    %v128 = vunpack.c.l.b16 %v83
    %v129 = vunpack.c.l.b16 %v84
    %v130 = vunpack.c.l.b16 %v85
    %v131 = vunpack.c.l.b16 %v86
    %v132 = vpack.c.b16 %v117, %v116
    %v133 = vpack.c.b16 %v119, %v118
    %v134 = vpack.c.b16 %v121, %v120
    %v135 = vpack.c.b16 %v123, %v122
    %v136 = vpack.c.b16 %v125, %v124
    %v137 = vpack.c.b16 %v127, %v126
    %v138 = vpack.c.b16 %v129, %v128
    %v139 = vpack.c.b16 %v131, %v130
    %148 = vmatprep.subr.bf16.mxu0 0
    %149 = vmatpush1.bf16.msra.mxu0 %v132
    %150 = vmatprep.subr.bf16.mxu0 0
    %151 = vmatpush1.bf16.msra.mxu0 %v133
    %152 = vmatprep.subr.bf16.mxu0 0
    %153 = vmatpush1.bf16.msra.mxu0 %v134
    %154 = vmatprep.subr.bf16.mxu0 0
    %155 = vmatpush1.bf16.msra.mxu0 %v135
    %156 = vmatprep.subr.bf16.mxu0 0
    %157 = vmatpush1.bf16.msra.mxu0 %v136
    %158 = vmatprep.subr.bf16.mxu0 0
    %159 = vmatpush1.bf16.msra.mxu0 %v137
    %160 = vmatprep.subr.bf16.mxu0 0
    %161 = vmatpush1.bf16.msra.mxu0 %v138
    %162 = vmatprep.subr.bf16.mxu0 0
    %163 = vmatpush1.bf16.msra.mxu0 %v139
    %164 = vmatprep.subr.bf16.mxu0 0
    %165 = vmatpush1.bf16.msra.mxu0 0
    %166 = vmatprep.subr.bf16.mxu0 0
    %167 = vmatpush1.bf16.msra.mxu0 0
    %168 = vmatprep.subr.bf16.mxu0 0
    %169 = vmatpush1.bf16.msra.mxu0 0
    %170 = vmatprep.subr.bf16.mxu0 0
    %171 = vmatpush1.bf16.msra.mxu0 0
    %172 = vmatprep.subr.bf16.mxu0 0
    %173 = vmatpush1.bf16.msra.mxu0 0
    %174 = vmatprep.subr.bf16.mxu0 0
    %175 = vmatpush1.bf16.msra.mxu0 0
    %176 = vmatprep.subr.bf16.mxu0 0
    %177 = vmatpush1.bf16.msra.mxu0 0
    %178 = vmatprep.subr.bf16.mxu0 0
    %179 = vmatpush1.bf16.msra.mxu0 0
    %180 = vmatprep.mubr.bf16.mxu0 0
    %181 = vmatmul.mubr.bf16.gmra.mrb[0].mxu0 %v98
    %v182 = vpop.f32.mrb[0].mxu0
    %v183 = vadd.f32 %v92, %v182
    %v184 = vpop.f32.mrb[0].mxu0
    %v185 = vpop.f32.mrb[0].mxu0
    %v186 = vadd.f32 %v92, %v185
    %v187 = vpop.f32.mrb[0].mxu0
    %188 = vdwg.mxu0
    %v189 = vtanh.pop %v183
    %v190 = vtanh.pop %v186
    %191 = vadd.xlane.f32.xlu0 %v189
    %v192 = vpop.xlane.xlu0 %191
    %193 = vadd.xlane.f32.xlu0 %v190
    %v194 = vpop.xlane.xlu0 %193
    %v195 = vmul.f32 %v189, %v189
    %v196 = vmul.f32 %v190, %v190
    %197 = vadd.xlane.f32.xlu0 %v195
    %v198 = vpop.xlane.xlu0 %197
    %199 = vadd.xlane.f32.xlu0 %v196
    %v200 = vpop.xlane.xlu0 %199
    %v201 = vmul.f32 %v192, 0.0078125
    %v202 = vmul.f32 %v194, 0.0078125
    %v203 = vmul.f32 %v198, 0.0078125
    %v204 = vmul.f32 %v200, 0.0078125
    %v205 = vmul.f32 %v201, %v201
    %v206 = vmul.f32 %v202, %v202
    %v207 = vsub.f32 %v203, %v205
    %v208 = vsub.f32 %v204, %v206
    %v209 = vsub.f32 %v189, %v201
    %v210 = vsub.f32 %v190, %v202
    %v211 = vadd.f32 %v207, 1e-05
    %v212 = vadd.f32 %v208, 1e-05
    %v213 = vrsqrt.pop %v211
    %v214 = vrsqrt.pop %v212
    %v215 = vmul.f32 %v209, %v213
    %v216 = vmul.f32 %v210, %v214
    %v217 = vld [vmem:[%s3] sm:$0x1]
    %v219 = vlaneseq
    %v220 = vshrl.u32 %v219, 7
    %v221 = vsub.s32 0, %v220
    %v222 = vrot.slane %v217, %v221
    %v224 = vmul.f32 %v215, %v222
    %v225 = vmul.f32 %v216, %v222
    %v226 = vld [vmem:[%s4] sm:$0x1]
    %v228 = vlaneseq
    %v229 = vshrl.u32 %v228, 7
    %v230 = vsub.s32 0, %v229
    %v231 = vrot.slane %v226, %v230
    %v233 = vadd.f32 %v224, %v231
    %v234 = vadd.f32 %v225, %v231
    %v235 = vpack.c.bf16 %v234, %v233
    %v236 = vld [vmem:[#allocation7] sm:$0xf]
    %v237 = vld [vmem:[#allocation7 + $0x4] sm:$0xf]
    %v238 = vld [vmem:[#allocation7 + $0x8] sm:$0xf]
    %v239 = vld [vmem:[#allocation7 + $0xc] sm:$0xf]
    %v240 = vld [vmem:[#allocation7 + $0x10] sm:$0xf]
    %v241 = vld [vmem:[#allocation7 + $0x14] sm:$0xf]
    %v242 = vld [vmem:[#allocation7 + $0x18] sm:$0xf]
    %v243 = vld [vmem:[#allocation7 + $0x1c] sm:$0xf]
    %v244 = vld [vmem:[#allocation7 + $0x20] sm:$0xf]
    %v245 = vld [vmem:[#allocation7 + $0x24] sm:$0xf]
    %v246 = vld [vmem:[#allocation7 + $0x28] sm:$0xf]
    %v247 = vld [vmem:[#allocation7 + $0x2c] sm:$0xf]
    %v248 = vld [vmem:[#allocation7 + $0x30] sm:$0xf]
    %v249 = vld [vmem:[#allocation7 + $0x34] sm:$0xf]
    %v250 = vld [vmem:[#allocation7 + $0x38] sm:$0xf]
    %v251 = vld [vmem:[#allocation7 + $0x3c] sm:$0xf]
    %v252 = vld [vmem:[%s6] sm:$0x1]
    %v254 = vlaneseq
    %v255 = vshrl.u32 %v254, 7
    %v256 = vsub.s32 0, %v255
    %v257 = vrot.slane %v252, %v256
    %v275 = vunpack.c.l.b16 %v236
    %v276 = vunpack.c.l.b16 %v237
    %v277 = vunpack.c.l.b16 %v238
    %v278 = vunpack.c.l.b16 %v239
    %v279 = vunpack.c.l.b16 %v240
    %v280 = vunpack.c.l.b16 %v241
    %v281 = vunpack.c.l.b16 %v242
    %v282 = vunpack.c.l.b16 %v243
    %v283 = vunpack.c.l.b16 %v244
    %v284 = vunpack.c.l.b16 %v245
    %v285 = vunpack.c.l.b16 %v246
    %v286 = vunpack.c.l.b16 %v247
    %v287 = vunpack.c.l.b16 %v248
    %v288 = vunpack.c.l.b16 %v249
    %v289 = vunpack.c.l.b16 %v250
    %v290 = vunpack.c.l.b16 %v251
    %v291 = vpack.c.b16 %v276, %v275
    %v292 = vpack.c.b16 %v278, %v277
    %v293 = vpack.c.b16 %v280, %v279
    %v294 = vpack.c.b16 %v282, %v281
    %v295 = vpack.c.b16 %v284, %v283
    %v296 = vpack.c.b16 %v286, %v285
    %v297 = vpack.c.b16 %v288, %v287
    %v298 = vpack.c.b16 %v290, %v289
    %307 = vmatprep.subr.bf16.mxu0 0
    %308 = vmatpush1.bf16.msra.mxu0 %v291
    %309 = vmatprep.subr.bf16.mxu0 0
    %310 = vmatpush1.bf16.msra.mxu0 %v292
    %311 = vmatprep.subr.bf16.mxu0 0
    %312 = vmatpush1.bf16.msra.mxu0 %v293
    %313 = vmatprep.subr.bf16.mxu0 0
    %314 = vmatpush1.bf16.msra.mxu0 %v294
    %315 = vmatprep.subr.bf16.mxu0 0
    %316 = vmatpush1.bf16.msra.mxu0 %v295
    %317 = vmatprep.subr.bf16.mxu0 0
    %318 = vmatpush1.bf16.msra.mxu0 %v296
    %319 = vmatprep.subr.bf16.mxu0 0
    %320 = vmatpush1.bf16.msra.mxu0 %v297
    %321 = vmatprep.subr.bf16.mxu0 0
    %322 = vmatpush1.bf16.msra.mxu0 %v298
    %323 = vmatprep.subr.bf16.mxu0 0
    %324 = vmatpush1.bf16.msra.mxu0 0
    %325 = vmatprep.subr.bf16.mxu0 0
    %326 = vmatpush1.bf16.msra.mxu0 0
    %327 = vmatprep.subr.bf16.mxu0 0
    %328 = vmatpush1.bf16.msra.mxu0 0
    %329 = vmatprep.subr.bf16.mxu0 0
    %330 = vmatpush1.bf16.msra.mxu0 0
    %331 = vmatprep.subr.bf16.mxu0 0
    %332 = vmatpush1.bf16.msra.mxu0 0
    %333 = vmatprep.subr.bf16.mxu0 0
    %334 = vmatpush1.bf16.msra.mxu0 0
    %335 = vmatprep.subr.bf16.mxu0 0
    %336 = vmatpush1.bf16.msra.mxu0 0
    %337 = vmatprep.subr.bf16.mxu0 0
    %338 = vmatpush1.bf16.msra.mxu0 0
    %339 = vmatprep.mubr.bf16.mxu0 0
    %340 = vmatmul.mubr.bf16.gmra.mrb[0].mxu0 %v235
    %v341 = vpop.f32.mrb[0].mxu0
    %v342 = vadd.f32 %v257, %v341
    %v343 = vpop.f32.mrb[0].mxu0
    %v344 = vpop.f32.mrb[0].mxu0
    %v345 = vadd.f32 %v257, %v344
    %v346 = vpop.f32.mrb[0].mxu0
    %347 = vdwg.mxu0
    %v348 = vpack.c.bf16 %v345, %v342
    %v350 = vunpack.c.l.b16 %v348
    %v351 = vunpack.c.h.b16 %v348
    %v352 = vpack.c.b16 %v350, %v350
    %v353 = vpack.c.b16 %v351, %v351
    %356 = vst [vmem:[#allocation8] sm:$0xf] %v352
    %357 = vst [vmem:[#allocation8 + $0x4] sm:$0xf] %v353
    // Predicated region
    $region42: #{tpu_custom_call.1} parent=1 // pred_check
      _
    $region43: #{tpu_custom_call.1} parent=1 // pred_check_branch
      %359 = sbr.rel (0) target = $region45
    $region44: #{tpu_custom_call.1} parent=1 // pred_region
      %s361 = ssub.s32 128, 128
      %362 = vsyncadd [#allocation4], %s361
      %s363 = sshll.u32 [#allocation8], 4
      %s364 = int_to_ptr.vmem [resolvable:$true] %s363
      %369 = dma.vmem_to_hbm [thread:$0]  %s364, 128, %s7, [#allocation4], 64, 64, 4
    $region45: #{tpu_custom_call.1} parent=1 // pred_fallthru
      _
    // Predicated region
    $region46: #{tpu_custom_call.1} parent=1 // pred_check
      _
    $region47: #{tpu_custom_call.1} parent=1 // pred_check_branch
      %371 = sbr.rel (0) target = $region49
    $region48: #{tpu_custom_call.1} parent=1 // pred_region
      %372 = dma.done [#allocation4], 128
    $region49: #{tpu_custom_call.1} parent=1 // pred_fallthru
      _
    %373 = vsyncpa [#allocation3], 1
    %374 = vsyncpa [#allocation6], 1
    %375 = vsyncpa [#allocation4], 1

// kernel: tpu_custom_call.1
$region0: #{tpu_custom_call.1}
  #allocation0 [shape = 'u32[]', space=smem, size = 0x4, offset = 0x4, fixed_abs, tag = 'smem constant byte address 0x4 - core index']
  #allocation1 [shape = 'u32[144,128]{1,0:T(1,128)}', space=vmem, size = 0x12000, scoped, tag = 'internal scratch']
  %s0 = inlined_call_operand.hbm [shape: bf16[16,128], index: 0, kind: input, shape index: {}]
  %s1 = inlined_call_operand.hbm [shape: bf16[128,128], index: 1, kind: input, shape index: {}]
  %s2 = inlined_call_operand.vmem [shape: f32[1,128], index: 2, kind: input, shape index: {}]
  %s3 = inlined_call_operand.vmem [shape: f32[1,128], index: 3, kind: input, shape index: {}]
  %s4 = inlined_call_operand.vmem [shape: f32[1,128], index: 4, kind: input, shape index: {}]
  %s5 = inlined_call_operand.hbm [shape: bf16[128,128], index: 5, kind: input, shape index: {}]
  %s6 = inlined_call_operand.vmem [shape: f32[1,128], index: 6, kind: input, shape index: {}]
  %s7 = inlined_call_operand.hbm [shape: bf16[16,128], index: 7, kind: output, shape index: {}]
  %s8 = sld [smem:[#allocation0]]
  $region50: #{tpu_custom_call.1} parent=0
    _
  %s10 = ssub.s32 1, %s8
  %s11 = scalar_select 0, %s10, %s8
  $region1: #{tpu_custom_call.1} parent=0
    #allocation2 [shape = 'u8[4096]{0}', space=vmem, size = 0x1000, scoped, tag = 'input window, operand 0, single buffered']
    #allocation3 [shape = 's32[1]{0}', space=sflag, size = 0x4, scoped, tag = 'scoped memory for tpu_custom_call.1']
    #allocation4 [shape = 's32[1]{0}', space=sflag, size = 0x4, scoped, tag = 'scoped memory for tpu_custom_call.1']
    #allocation5 [shape = 'u8[32768]{0}', space=vmem, size = 0x8000, scoped, tag = 'input window, operand 1, single buffered']
    #allocation6 [shape = 's32[1]{0}', space=sflag, size = 0x4, scoped, tag = 'scoped memory for tpu_custom_call.1']
    #allocation7 [shape = 'u8[32768]{0}', space=vmem, size = 0x8000, scoped, tag = 'input window, operand 5, single buffered']
    #allocation8 [shape = 'u8[4096]{0}', space=vmem, size = 0x1000, scoped, tag = 'output window, operand 0, single buffered']
    %12 = vsyncpa [#allocation3], 0
    %13 = vsyncpa [#allocation6], 0
    %14 = vsyncpa [#allocation4], 0
    // Predicated region
    $region2: #{tpu_custom_call.1} parent=1 // pred_check
      _
    $region3: #{tpu_custom_call.1} parent=1 // pred_check_branch
      %16 = sbr.rel (0) target = $region5
    $region4: #{tpu_custom_call.1} parent=1 // pred_region
      %s18 = ssub.s32 128, 128
      %19 = vsyncadd [#allocation3], %s18
      %s20 = sshll.u32 [#allocation2], 4
      %s21 = int_to_ptr.vmem [resolvable:$true] %s20
      %26 = dma.hbm_to_vmem [thread:$0]  %s0, 128, %s21, [#allocation3], 64, 64, 4
    $region5: #{tpu_custom_call.1} parent=1 // pred_fallthru
      _
    // Predicated region
    $region6: #{tpu_custom_call.1} parent=1 // pred_check
      _
    $region7: #{tpu_custom_call.1} parent=1 // pred_check_branch
      %28 = sbr.rel (0) target = $region9
    $region8: #{tpu_custom_call.1} parent=1 // pred_region
      %s30 = ssub.s32 1024, 1024
      %31 = vsyncadd [#allocation6], %s30
      %s32 = sshll.u32 [#allocation5], 4
      %s33 = int_to_ptr.vmem [resolvable:$true] %s32
      %38 = dma.hbm_to_vmem [thread:$0]  %s1, 1024, %s33, [#allocation6], 64, 64, 4
    $region9: #{tpu_custom_call.1} parent=1 // pred_fallthru
      _
    // Predicated region
    $region10: #{tpu_custom_call.1} parent=1 // pred_check
      _
    $region11: #{tpu_custom_call.1} parent=1 // pred_check_branch
      %40 = sbr.rel (0) target = $region13
    $region12: #{tpu_custom_call.1} parent=1 // pred_region
      _
    $region13: #{tpu_custom_call.1} parent=1 // pred_fallthru
      _
    // Predicated region
    $region14: #{tpu_custom_call.1} parent=1 // pred_check
      _
    $region15: #{tpu_custom_call.1} parent=1 // pred_check_branch
      %42 = sbr.rel (0) target = $region17
    $region16: #{tpu_custom_call.1} parent=1 // pred_region
      _
    $region17: #{tpu_custom_call.1} parent=1 // pred_fallthru
      _
    // Predicated region
    $region18: #{tpu_custom_call.1} parent=1 // pred_check
      _
    $region19: #{tpu_custom_call.1} parent=1 // pred_check_branch
      %44 = sbr.rel (0) target = $region21
    $region20: #{tpu_custom_call.1} parent=1 // pred_region
      _
    $region21: #{tpu_custom_call.1} parent=1 // pred_fallthru
      _
    // Predicated region
    $region22: #{tpu_custom_call.1} parent=1 // pred_check
      _
    $region23: #{tpu_custom_call.1} parent=1 // pred_check_branch
      %46 = sbr.rel (0) target = $region25
    $region24: #{tpu_custom_call.1} parent=1 // pred_region
      %s48 = ssub.s32 1024, 1024
      %49 = vsyncadd [#allocation6], %s48
      %s50 = sshll.u32 [#allocation7], 4
      %s51 = int_to_ptr.vmem [resolvable:$true] %s50
      %56 = dma.hbm_to_vmem [thread:$0]  %s5, 1024, %s51, [#allocation6], 64, 64, 4
    $region25: #{tpu_custom_call.1} parent=1 // pred_fallthru
      _
    // Predicated region
    $region26: #{tpu_custom_call.1} parent=1 // pred_check
      _
    $region27: #{tpu_custom_call.1} parent=1 // pred_check_branch
      %58 = sbr.rel (0) target = $region29
    $region28: #{tpu_custom_call.1} parent=1 // pred_region
      _
    $region29: #{tpu_custom_call.1} parent=1 // pred_fallthru
      _
    // Predicated region
    $region30: #{tpu_custom_call.1} parent=1 // pred_check
      _
    $region31: #{tpu_custom_call.1} parent=1 // pred_check_branch
      %60 = sbr.rel (0) target = $region33
    $region32: #{tpu_custom_call.1} parent=1 // pred_region
      %61 = dma.done [#allocation3], 128
    $region33: #{tpu_custom_call.1} parent=1 // pred_fallthru
      _
    // Predicated region
    $region34: #{tpu_custom_call.1} parent=1 // pred_check
      _
    $region35: #{tpu_custom_call.1} parent=1 // pred_check_branch
      %63 = sbr.rel (0) target = $region37
    $region36: #{tpu_custom_call.1} parent=1 // pred_region
      %64 = dma.done [#allocation6], 1024
    $region37: #{tpu_custom_call.1} parent=1 // pred_fallthru
      _
    // Predicated region
    $region38: #{tpu_custom_call.1} parent=1 // pred_check
      _
    $region39: #{tpu_custom_call.1} parent=1 // pred_check_branch
      %66 = sbr.rel (0) target = $region41
    $region40: #{tpu_custom_call.1} parent=1 // pred_region
      %67 = dma.done [#allocation6], 1024
    $region41: #{tpu_custom_call.1} parent=1 // pred_fallthru
      _
    %v69 = vld [vmem:[#allocation2] sm:$0xf]
    %v70 = vld [vmem:[#allocation2 + $0x4] sm:$0xf]
    %v71 = vld [vmem:[#allocation5] sm:$0xf]
    %v72 = vld [vmem:[#allocation5 + $0x4] sm:$0xf]
    %v73 = vld [vmem:[#allocation5 + $0x8] sm:$0xf]
    %v74 = vld [vmem:[#allocation5 + $0xc] sm:$0xf]
    %v75 = vld [vmem:[#allocation5 + $0x10] sm:$0xf]
    %v76 = vld [vmem:[#allocation5 + $0x14] sm:$0xf]
    %v77 = vld [vmem:[#allocation5 + $0x18] sm:$0xf]
    %v78 = vld [vmem:[#allocation5 + $0x1c] sm:$0xf]
    %v79 = vld [vmem:[#allocation5 + $0x20] sm:$0xf]
    %v80 = vld [vmem:[#allocation5 + $0x24] sm:$0xf]
    %v81 = vld [vmem:[#allocation5 + $0x28] sm:$0xf]
    %v82 = vld [vmem:[#allocation5 + $0x2c] sm:$0xf]
    %v83 = vld [vmem:[#allocation5 + $0x30] sm:$0xf]
    %v84 = vld [vmem:[#allocation5 + $0x34] sm:$0xf]
    %v85 = vld [vmem:[#allocation5 + $0x38] sm:$0xf]
    %v86 = vld [vmem:[#allocation5 + $0x3c] sm:$0xf]
    %v87 = vld [vmem:[%s2] sm:$0x1]
    %v89 = vlaneseq
    %v90 = vshrl.u32 %v89, 7
    %v91 = vsub.s32 0, %v90
    %v92 = vrot.slane %v87, %v91
    %v96 = vunpack.c.l.b16 %v69
    %v97 = vunpack.c.l.b16 %v70
    %v98 = vpack.c.b16 %v97, %v96
    %v116 = vunpack.c.l.b16 %v71
    %v117 = vunpack.c.l.b16 %v72
    %v118 = vunpack.c.l.b16 %v73
    %v119 = vunpack.c.l.b16 %v74
    %v120 = vunpack.c.l.b16 %v75
    %v121 = vunpack.c.l.b16 %v76
    %v122 = vunpack.c.l.b16 %v77
    %v123 = vunpack.c.l.b16 %v78
    %v124 = vunpack.c.l.b16 %v79
    %v125 = vunpack.c.l.b16 %v80
    %v126 = vunpack.c.l.b16 %v81
    %v127 = vunpack.c.l.b16 %v82
    %v128 = vunpack.c.l.b16 %v83
    %v129 = vunpack.c.l.b16 %v84
    %v130 = vunpack.c.l.b16 %v85
    %v131 = vunpack.c.l.b16 %v86
    %v132 = vpack.c.b16 %v117, %v116
    %v133 = vpack.c.b16 %v119, %v118
    %v134 = vpack.c.b16 %v121, %v120
    %v135 = vpack.c.b16 %v123, %v122
    %v136 = vpack.c.b16 %v125, %v124
    %v137 = vpack.c.b16 %v127, %v126
    %v138 = vpack.c.b16 %v129, %v128
    %v139 = vpack.c.b16 %v131, %v130
    %148 = vmatprep.subr.bf16.mxu0 0
    %149 = vmatpush1.bf16.msra.mxu0 %v132
    %150 = vmatprep.subr.bf16.mxu0 0
    %151 = vmatpush1.bf16.msra.mxu0 %v133
    %152 = vmatprep.subr.bf16.mxu0 0
    %153 = vmatpush1.bf16.msra.mxu0 %v134
    %154 = vmatprep.subr.bf16.mxu0 0
    %155 = vmatpush1.bf16.msra.mxu0 %v135
    %156 = vmatprep.subr.bf16.mxu0 0
    %157 = vmatpush1.bf16.msra.mxu0 %v136
    %158 = vmatprep.subr.bf16.mxu0 0
    %159 = vmatpush1.bf16.msra.mxu0 %v137
    %160 = vmatprep.subr.bf16.mxu0 0
    %161 = vmatpush1.bf16.msra.mxu0 %v138
    %162 = vmatprep.subr.bf16.mxu0 0
    %163 = vmatpush1.bf16.msra.mxu0 %v139
    %164 = vmatprep.subr.bf16.mxu0 0
    %165 = vmatpush1.bf16.msra.mxu0 0
    %166 = vmatprep.subr.bf16.mxu0 0
    %167 = vmatpush1.bf16.msra.mxu0 0
    %168 = vmatprep.subr.bf16.mxu0 0
    %169 = vmatpush1.bf16.msra.mxu0 0
    %170 = vmatprep.subr.bf16.mxu0 0
    %171 = vmatpush1.bf16.msra.mxu0 0
    %172 = vmatprep.subr.bf16.mxu0 0
    %173 = vmatpush1.bf16.msra.mxu0 0
    %174 = vmatprep.subr.bf16.mxu0 0
    %175 = vmatpush1.bf16.msra.mxu0 0
    %176 = vmatprep.subr.bf16.mxu0 0
    %177 = vmatpush1.bf16.msra.mxu0 0
    %178 = vmatprep.subr.bf16.mxu0 0
    %179 = vmatpush1.bf16.msra.mxu0 0
    %180 = vmatprep.mubr.bf16.mxu0 0
    %181 = vmatmul.mubr.bf16.gmra.mrb[0].mxu0 %v98
    %v182 = vpop.f32.mrb[0].mxu0
    %v183 = vadd.f32 %v92, %v182
    %v184 = vpop.f32.mrb[0].mxu0
    %v185 = vpop.f32.mrb[0].mxu0
    %v186 = vadd.f32 %v92, %v185
    %v187 = vpop.f32.mrb[0].mxu0
    %188 = vdwg.mxu0
    %v189 = vtanh.pop %v183
    %v190 = vtanh.pop %v186
    %191 = vadd.xlane.f32.xlu0 %v189
    %v192 = vpop.xlane.xlu0 %191
    %193 = vadd.xlane.f32.xlu0 %v190
    %v194 = vpop.xlane.xlu0 %193
    %v195 = vmul.f32 %v189, %v189
    %v196 = vmul.f32 %v190, %v190
    %197 = vadd.xlane.f32.xlu0 %v195
    %v198 = vpop.xlane.xlu0 %197
    %199 = vadd.xlane.f32.xlu0 %v196
    %v200 = vpop.xlane.xlu0 %199
    %v201 = vmul.f32 %v192, 0.0078125
    %v202 = vmul.f32 %v194, 0.0078125
    %v203 = vmul.f32 %v198, 0.0078125
    %v204 = vmul.f32 %v200, 0.0078125
    %v205 = vmul.f32 %v201, %v201
    %v206 = vmul.f32 %v202, %v202
    %v207 = vsub.f32 %v203, %v205
    %v208 = vsub.f32 %v204, %v206
    %v209 = vsub.f32 %v189, %v201
    %v210 = vsub.f32 %v190, %v202
    %v211 = vadd.f32 %v207, 1e-05
    %v212 = vadd.f32 %v208, 1e-05
    %v213 = vrsqrt.pop %v211
    %v214 = vrsqrt.pop %v212
    %v215 = vmul.f32 %v209, %v213
    %v216 = vmul.f32 %v210, %v214
    %v217 = vld [vmem:[%s3] sm:$0x1]
    %v219 = vlaneseq
    %v220 = vshrl.u32 %v219, 7
    %v221 = vsub.s32 0, %v220
    %v222 = vrot.slane %v217, %v221
    %v224 = vmul.f32 %v215, %v222
    %v225 = vmul.f32 %v216, %v222
    %v226 = vld [vmem:[%s4] sm:$0x1]
    %v228 = vlaneseq
    %v229 = vshrl.u32 %v228, 7
    %v230 = vsub.s32 0, %v229
    %v231 = vrot.slane %v226, %v230
    %v233 = vadd.f32 %v224, %v231
    %v234 = vadd.f32 %v225, %v231
    %v235 = vpack.c.bf16 %v234, %v233
    %v236 = vld [vmem:[#allocation7] sm:$0xf]
    %v237 = vld [vmem:[#allocation7 + $0x4] sm:$0xf]
    %v238 = vld [vmem:[#allocation7 + $0x8] sm:$0xf]
    %v239 = vld [vmem:[#allocation7 + $0xc] sm:$0xf]
    %v240 = vld [vmem:[#allocation7 + $0x10] sm:$0xf]
    %v241 = vld [vmem:[#allocation7 + $0x14] sm:$0xf]
    %v242 = vld [vmem:[#allocation7 + $0x18] sm:$0xf]
    %v243 = vld [vmem:[#allocation7 + $0x1c] sm:$0xf]
    %v244 = vld [vmem:[#allocation7 + $0x20] sm:$0xf]
    %v245 = vld [vmem:[#allocation7 + $0x24] sm:$0xf]
    %v246 = vld [vmem:[#allocation7 + $0x28] sm:$0xf]
    %v247 = vld [vmem:[#allocation7 + $0x2c] sm:$0xf]
    %v248 = vld [vmem:[#allocation7 + $0x30] sm:$0xf]
    %v249 = vld [vmem:[#allocation7 + $0x34] sm:$0xf]
    %v250 = vld [vmem:[#allocation7 + $0x38] sm:$0xf]
    %v251 = vld [vmem:[#allocation7 + $0x3c] sm:$0xf]
    %v252 = vld [vmem:[%s6] sm:$0x1]
    %v254 = vlaneseq
    %v255 = vshrl.u32 %v254, 7
    %v256 = vsub.s32 0, %v255
    %v257 = vrot.slane %v252, %v256
    %v275 = vunpack.c.l.b16 %v236
    %v276 = vunpack.c.l.b16 %v237
    %v277 = vunpack.c.l.b16 %v238
    %v278 = vunpack.c.l.b16 %v239
    %v279 = vunpack.c.l.b16 %v240
    %v280 = vunpack.c.l.b16 %v241
    %v281 = vunpack.c.l.b16 %v242
    %v282 = vunpack.c.l.b16 %v243
    %v283 = vunpack.c.l.b16 %v244
    %v284 = vunpack.c.l.b16 %v245
    %v285 = vunpack.c.l.b16 %v246
    %v286 = vunpack.c.l.b16 %v247
    %v287 = vunpack.c.l.b16 %v248
    %v288 = vunpack.c.l.b16 %v249
    %v289 = vunpack.c.l.b16 %v250
    %v290 = vunpack.c.l.b16 %v251
    %v291 = vpack.c.b16 %v276, %v275
    %v292 = vpack.c.b16 %v278, %v277
    %v293 = vpack.c.b16 %v280, %v279
    %v294 = vpack.c.b16 %v282, %v281
    %v295 = vpack.c.b16 %v284, %v283
    %v296 = vpack.c.b16 %v286, %v285
    %v297 = vpack.c.b16 %v288, %v287
    %v298 = vpack.c.b16 %v290, %v289
    %307 = vmatprep.subr.bf16.mxu0 0
    %308 = vmatpush1.bf16.msra.mxu0 %v291
    %309 = vmatprep.subr.bf16.mxu0 0
    %310 = vmatpush1.bf16.msra.mxu0 %v292
    %311 = vmatprep.subr.bf16.mxu0 0
    %312 = vmatpush1.bf16.msra.mxu0 %v293
    %313 = vmatprep.subr.bf16.mxu0 0
    %314 = vmatpush1.bf16.msra.mxu0 %v294
    %315 = vmatprep.subr.bf16.mxu0 0
    %316 = vmatpush1.bf16.msra.mxu0 %v295
    %317 = vmatprep.subr.bf16.mxu0 0
    %318 = vmatpush1.bf16.msra.mxu0 %v296
    %319 = vmatprep.subr.bf16.mxu0 0
    %320 = vmatpush1.bf16.msra.mxu0 %v297
    %321 = vmatprep.subr.bf16.mxu0 0
    %322 = vmatpush1.bf16.msra.mxu0 %v298
    %323 = vmatprep.subr.bf16.mxu0 0
    %324 = vmatpush1.bf16.msra.mxu0 0
    %325 = vmatprep.subr.bf16.mxu0 0
    %326 = vmatpush1.bf16.msra.mxu0 0
    %327 = vmatprep.subr.bf16.mxu0 0
    %328 = vmatpush1.bf16.msra.mxu0 0
    %329 = vmatprep.subr.bf16.mxu0 0
    %330 = vmatpush1.bf16.msra.mxu0 0
    %331 = vmatprep.subr.bf16.mxu0 0
    %332 = vmatpush1.bf16.msra.mxu0 0
    %333 = vmatprep.subr.bf16.mxu0 0
    %334 = vmatpush1.bf16.msra.mxu0 0
    %335 = vmatprep.subr.bf16.mxu0 0
    %336 = vmatpush1.bf16.msra.mxu0 0
    %337 = vmatprep.subr.bf16.mxu0 0
    %338 = vmatpush1.bf16.msra.mxu0 0
    %339 = vmatprep.mubr.bf16.mxu0 0
    %340 = vmatmul.mubr.bf16.gmra.mrb[0].mxu0 %v235
    %v341 = vpop.f32.mrb[0].mxu0
    %v342 = vadd.f32 %v257, %v341
    %v343 = vpop.f32.mrb[0].mxu0
    %v344 = vpop.f32.mrb[0].mxu0
    %v345 = vadd.f32 %v257, %v344
    %v346 = vpop.f32.mrb[0].mxu0
    %347 = vdwg.mxu0
    %v348 = vpack.c.bf16 %v345, %v342
    %v350 = vunpack.c.l.b16 %v348
    %v351 = vunpack.c.h.b16 %v348
    %v352 = vpack.c.b16 %v350, %v350
    %v353 = vpack.c.b16 %v351, %v351
    %356 = vst [vmem:[#allocation8] sm:$0xf] %v352
    %357 = vst [vmem:[#allocation8 + $0x4] sm:$0xf] %v353
    // Predicated region
    $region42: #{tpu_custom_call.1} parent=1 // pred_check
      _
    $region43: #{tpu_custom_call.1} parent=1 // pred_check_branch
      %359 = sbr.rel (0) target = $region45
    $region44: #{tpu_custom_call.1} parent=1 // pred_region
      %s361 = ssub.s32 128, 128
      %362 = vsyncadd [#allocation4], %s361
      %s363 = sshll.u32 [#allocation8], 4
      %s364 = int_to_ptr.vmem [resolvable:$true] %s363
      %369 = dma.vmem_to_hbm [thread:$0]  %s364, 128, %s7, [#allocation4], 64, 64, 4
    $region45: #{tpu_custom_call.1} parent=1 // pred_fallthru
      _
    // Predicated region
    $region46: #{tpu_custom_call.1} parent=1 // pred_check
      _
    $region47: #{tpu_custom_call.1} parent=1 // pred_check_branch
      %371 = sbr.rel (0) target = $region49
    $region48: #{tpu_custom_call.1} parent=1 // pred_region
      %372 = dma.done [#allocation4], 128
    $region49: #{tpu_custom_call.1} parent=1 // pred_fallthru
      _
    %373 = vsyncpa [#allocation3], 1
    %374 = vsyncpa [#allocation6], 1
    %375 = vsyncpa [#allocation4], 1

</llo_original>
